<compile_context>
chip_gen: v7x
topology: tpu7x:2x2x1
jax: 0.10.0
libtpu: 0.0.40
codegen_flags: <defaults>
</compile_context>

<pallas_src>
import functools

import jax
import jax.numpy as jnp
from jax import lax
from jax.experimental import pallas as pl
from jax.experimental.pallas import tpu as pltpu

HIDDEN = 125      # `hidden_featrues` in the PyTorch module
HP = 128          # lane-padded hidden size
G4 = 4 * HP       # packed gate width (i, f, g, o), one 128-lane block per gate
K2 = 2 * HP       # fused layer-2 contraction depth ([h1_new ; h2])


# ---------------------------------------------------------------------------
# Shared compute body (fused-gate LSTM stack + linear head), pure on arrays.
# ---------------------------------------------------------------------------
def _sigmoid1(x):
    # sigmoid(x) == 0.5 * tanh(x / 2) + 0.5  -> guaranteed single EUP op per vreg.
    return 0.5 * jnp.tanh(0.5 * x) + 0.5


def _lstm_stack(x, h1, c1, h2, c2, w1x, w1h, b1, w2, b2, wl, bl):
    f32 = jnp.float32
    bf16 = jnp.bfloat16

    # ----- LSTM cell 1: input (B,1) -> hidden (B,HP) -----------------------
    # K=1 input contribution on the VPU (broadcast multiply); hidden contribution
    # is one packed (B,128)@(128,512) bf16 MXU matmul with f32 accumulation.
    pre1 = (x * w1x
            + jnp.dot(h1.astype(bf16), w1h, preferred_element_type=f32)
            + b1)
    i1 = _sigmoid1(pre1[:, 0 * HP:1 * HP])
    f1 = _sigmoid1(pre1[:, 1 * HP:2 * HP])
    g1 = jnp.tanh(pre1[:, 2 * HP:3 * HP])
    o1 = _sigmoid1(pre1[:, 3 * HP:4 * HP])
    c1n = f1 * c1 + i1 * g1
    h1n = o1 * jnp.tanh(c1n)

    # ----- LSTM cell 2: fused K=256 matmul  ([h1n, h2] @ [w_ih2; w_hh2]) ----
    lhs2 = jnp.concatenate([h1n, h2], axis=-1).astype(bf16)       # (B, 256)
    pre2 = jnp.dot(lhs2, w2, preferred_element_type=f32) + b2      # (B, 512)
    i2 = _sigmoid1(pre2[:, 0 * HP:1 * HP])
    f2 = _sigmoid1(pre2[:, 1 * HP:2 * HP])
    g2 = jnp.tanh(pre2[:, 2 * HP:3 * HP])
    o2 = _sigmoid1(pre2[:, 3 * HP:4 * HP])
    c2n = f2 * c2 + i2 * g2
    h2n = o2 * jnp.tanh(c2n)

    # ----- Linear head: N=1 matmul as VPU multiply + lane reduction ---------
    out = jnp.sum(h2n * wl, axis=-1, keepdims=True) + bl           # (B, 1)
    return out, h1n, c1n, h2n, c2n


# ---------------------------------------------------------------------------
# Single-step kernel (== Sequence.forward)
# ---------------------------------------------------------------------------
def _step_kernel(x_ref, h1_ref, c1_ref, h2_ref, c2_ref,
                 w1x_ref, w1h_ref, b1_ref, w2_ref, b2_ref, wl_ref, bl_ref,
                 out_ref, h1o_ref, c1o_ref, h2o_ref, c2o_ref):
    out, h1n, c1n, h2n, c2n = _lstm_stack(
        x_ref[...], h1_ref[...], c1_ref[...], h2_ref[...], c2_ref[...],
        w1x_ref[...], w1h_ref[...], b1_ref[...],
        w2_ref[...], b2_ref[...], wl_ref[...], bl_ref[...])
    out_ref[...] = jnp.broadcast_to(out, out_ref.shape)   # lane-dense output
    h1o_ref[...] = h1n
    c1o_ref[...] = c1n
    h2o_ref[...] = h2n
    c2o_ref[...] = c2n


def _maybe_pad_state(a):
    a = a.astype(jnp.float32)
    if a.shape[-1] == HP:
        return a
    return jnp.pad(a, ((0, 0), (0, HP - a.shape[-1])))


def sequence_forward(x, h1, c1, h2, c2, packed, *, keep_padded=False):
    """One timestep of the Sequence module.

    States may be (B, 125) or already-padded (B, 128); x is (B, 1).
    With keep_padded=True the returned states stay (B, 128) so a caller looping
    over time avoids the per-call pad/slice XLA ops.
    """
    B = x.shape[0]
    h1p, c1p, h2p, c2p = map(_maybe_pad_state, (h1, c1, h2, c2))

    vmem = pl.BlockSpec(memory_space=pltpu.MemorySpace.VMEM)
    out_shapes = tuple(jax.ShapeDtypeStruct((B, HP), jnp.float32) for _ in range(5))

    out, h1n, c1n, h2n, c2n = pl.pallas_call(
        _step_kernel,
        out_shape=out_shapes,
        in_specs=[vmem] * 12,
        out_specs=(vmem,) * 5,
    )(x.astype(jnp.float32), h1p, c1p, h2p, c2p,
      packed["w1x"], packed["w1h"], packed["b1"],
      packed["w2"], packed["b2"], packed["wl"], packed["bl"])

    if keep_padded:
        return out[:, :1], h1n, c1n, h2n, c2n
    return (out[:, :1], h1n[:, :HIDDEN], c1n[:, :HIDDEN],
            h2n[:, :HIDDEN], c2n[:, :HIDDEN])


# ---------------------------------------------------------------------------
# T-step kernel: time loop inside one pallas_call, Tc timesteps per grid step.
# Weights resident in VMEM (constant index_maps); h/c carried in vregs within a
# chunk and in the resident final-state output blocks across chunks (no scratch).
# ---------------------------------------------------------------------------
def _scan_kernel(x_ref, h10_ref, c10_ref, h20_ref, c20_ref,
                 w1x_ref, w1h_ref, b1_ref, w2_ref, b2_ref, wl_ref, bl_ref,
                 outs_ref, h1f_ref, c1f_ref, h2f_ref, c2f_ref,
                 *, tc, total_t):
    t = pl.program_id(0)

    @pl.when(t == 0)
    def _():
        h1f_ref[...] = h10_ref[...]
        c1f_ref[...] = c10_ref[...]
        h2f_ref[...] = h20_ref[...]
        c2f_ref[...] = c20_ref[...]

    # Hoist weight loads out of the unrolled time loop.
    w1x = w1x_ref[...]
    w1h = w1h_ref[...]
    b1 = b1_ref[...]
    w2 = w2_ref[...]
    b2 = b2_ref[...]
    wl = wl_ref[...]
    bl = bl_ref[...]

    needs_mask = (total_t % tc) != 0   # padded tail steps must not advance state

    def body(j, carry):
        h1, c1, h2, c2 = carry
        out, h1n, c1n, h2n, c2n = _lstm_stack(
            x_ref[j], h1, c1, h2, c2, w1x, w1h, b1, w2, b2, wl, bl)
        outs_ref[j] = jnp.broadcast_to(out, outs_ref.shape[1:])   # lane-dense
        if needs_mask:
            valid = (t * tc + j) < total_t
            h1n = jnp.where(valid, h1n, h1)
            c1n = jnp.where(valid, c1n, c1)
            h2n = jnp.where(valid, h2n, h2)
            c2n = jnp.where(valid, c2n, c2)
        return h1n, c1n, h2n, c2n

    carry = (h1f_ref[...], c1f_ref[...], h2f_ref[...], c2f_ref[...])
    h1, c1, h2, c2 = lax.fori_loop(0, tc, body, carry, unroll=True)

    # One state store per chunk (these blocks are resident across grid steps and
    # double as the carried state for the next chunk).
    h1f_ref[...] = h1
    c1f_ref[...] = c1
    h2f_ref[...] = h2
    c2f_ref[...] = c2


def sequence_forward_scan(xs, h1, c1, h2, c2, packed, *, tc=8):
    """Run T timesteps of the Sequence module inside a single pallas_call.

    xs: (T, B, 1).  Returns (outputs (T,B,1), h_t, c_t, h_t2, c_t2) with final
    states of shape (B, 125).
    """
    T, B = xs.shape[0], xs.shape[1]
    tc = max(1, min(tc, T))
    n_chunks = pl.cdiv(T, tc)
    Tp = n_chunks * tc

    xs_p = xs.astype(jnp.float32)
    if Tp != T:
        xs_p = jnp.pad(xs_p, ((0, Tp - T), (0, 0), (0, 0)))
    h1p, c1p, h2p, c2p = map(_maybe_pad_state, (h1, c1, h2, c2))

    def const(shape):
        return pl.BlockSpec(shape, lambda t: (0,) * len(shape))

    in_specs = [
        pl.BlockSpec((tc, B, 1), lambda t: (t, 0, 0)),   # xs: one coarse DMA / chunk
        const((B, HP)), const((B, HP)),                  # h1_0, c1_0
        const((B, HP)), const((B, HP)),                  # h2_0, c2_0
        const((1, G4)),                                  # w1x  (f32, VPU)
        const((HP, G4)),                                 # w1h  (bf16)
        const((1, G4)),                                  # b1
        const((K2, G4)),                                 # w2   (bf16, fused [ih2;hh2])
        const((1, G4)),                                  # b2
        const((1, HP)),                                  # wl
        const((1, 1)),                                   # bl
    ]
    out_specs = (
        pl.BlockSpec((tc, B, HP), lambda t: (t, 0, 0)),  # per-step outputs
        const((B, HP)), const((B, HP)),                  # final h1, c1 (resident carry)
        const((B, HP)), const((B, HP)),                  # final h2, c2 (resident carry)
    )
    out_shapes = (
        jax.ShapeDtypeStruct((Tp, B, HP), jnp.float32),
        jax.ShapeDtypeStruct((B, HP), jnp.float32),
        jax.ShapeDtypeStruct((B, HP), jnp.float32),
        jax.ShapeDtypeStruct((B, HP), jnp.float32),
        jax.ShapeDtypeStruct((B, HP), jnp.float32),
    )

    outs, h1n, c1n, h2n, c2n = pl.pallas_call(
        functools.partial(_scan_kernel, tc=tc, total_t=T),
        out_shape=out_shapes,
        grid=(n_chunks,),
        in_specs=in_specs,
        out_specs=out_specs,
        compiler_params=pltpu.CompilerParams(
            dimension_semantics=("arbitrary",)),   # sequential recurrence
    )(xs_p, h1p, c1p, h2p, c2p,
      packed["w1x"], packed["w1h"], packed["b1"],
      packed["w2"], packed["b2"], packed["wl"], packed["bl"])

    return (outs[:T, :, :1], h1n[:, :HIDDEN], c1n[:, :HIDDEN],
            h2n[:, :HIDDEN], c2n[:, :HIDDEN])


# ---------------------------------------------------------------------------
# Parameters: PyTorch-shaped init + packing into 128-padded fused-gate layout.
# ---------------------------------------------------------------------------
def init_params(key):
    """Random params with PyTorch LSTMCell / Linear shapes, U(-1/sqrt(H), 1/sqrt(H))."""
    H = HIDDEN
    bound = float(H) ** -0.5
    ks = jax.random.split(key, 10)

    def u(k_, shape):
        return jax.random.uniform(k_, shape, jnp.float32, -bound, bound)

    return dict(
        w_ih1=u(ks[0], (4 * H, 1)), w_hh1=u(ks[1], (4 * H, H)),
        b_ih1=u(ks[2], (4 * H,)),   b_hh1=u(ks[3], (4 * H,)),
        w_ih2=u(ks[4], (4 * H, H)), w_hh2=u(ks[5], (4 * H, H)),
        b_ih2=u(ks[6], (4 * H,)),   b_hh2=u(ks[7], (4 * H,)),
        w_l=u(ks[8], (1, H)),       b_l=u(ks[9], (1,)),
    )


def _pack_gates_into(out, w, row_off):
    """Write a PyTorch (4H, In) gate-stacked weight, transposed, into `out`
    starting at row `row_off`, with each gate in its own 128-aligned column
    block (order i, f, g, o)."""
    In = w.shape[1]
    for g in range(4):
        blk = w[g * HIDDEN:(g + 1) * HIDDEN, :]              # (H, In)
        out = out.at[row_off:row_off + In, g * HP:g * HP + HIDDEN].set(blk.T)
    return out


def _pack_gate_bias(b_ih, b_hh):
    b = (b_ih + b_hh).astype(jnp.float32)
    out = jnp.zeros((1, G4), jnp.float32)
    for g in range(4):
        out = out.at[0, g * HP:g * HP + HIDDEN].set(b[g * HIDDEN:(g + 1) * HIDDEN])
    return out


def pack_params(p):
    w1x = _pack_gates_into(jnp.zeros((1, G4), jnp.float32), p["w_ih1"], 0)
    w1h = _pack_gates_into(jnp.zeros((HP, G4), jnp.float32), p["w_hh1"], 0)
    w2 = jnp.zeros((K2, G4), jnp.float32)
    w2 = _pack_gates_into(w2, p["w_ih2"], 0)    # rows 0:128   multiply h1_new
    w2 = _pack_gates_into(w2, p["w_hh2"], HP)   # rows 128:256 multiply h2
    return dict(
        w1x=w1x,                                          # (1,   512) f32 (VPU)
        w1h=w1h.astype(jnp.bfloat16),                     # (128, 512) bf16 (MXU)
        b1=_pack_gate_bias(p["b_ih1"], p["b_hh1"]),       # (1,   512) f32
        w2=w2.astype(jnp.bfloat16),                       # (256, 512) bf16 (MXU)
        b2=_pack_gate_bias(p["b_ih2"], p["b_hh2"]),       # (1,   512) f32
        wl=jnp.zeros((1, HP), jnp.float32).at[0, :HIDDEN].set(p["w_l"][0]),
        bl=p["b_l"].reshape(1, 1).astype(jnp.float32),
    )


# ---------------------------------------------------------------------------
# Plain-JAX reference (mirrors torch.nn.LSTMCell / Linear exactly, full f32).
# ---------------------------------------------------------------------------
def _lstm_cell_ref(x, h, c, w_ih, w_hh, b_ih, b_hh):
    z = x @ w_ih.T + h @ w_hh.T + b_ih + b_hh
    i, f, g, o = jnp.split(z, 4, axis=-1)
    i = jax.nn.sigmoid(i)
    f = jax.nn.sigmoid(f)
    g = jnp.tanh(g)
    o = jax.nn.sigmoid(o)
    c_new = f * c + i * g
    h_new = o * jnp.tanh(c_new)
    return h_new, c_new


def _reference_step(x, h1, c1, h2, c2, p):
    h1n, c1n = _lstm_cell_ref(x, h1, c1, p["w_ih1"], p["w_hh1"], p["b_ih1"], p["b_hh1"])
    h2n, c2n = _lstm_cell_ref(h1n, h2, c2, p["w_ih2"], p["w_hh2"], p["b_ih2"], p["b_hh2"])
    out = h2n @ p["w_l"].T + p["b_l"]
    return out, h1n, c1n, h2n, c2n


if __name__ == "__main__":
    key = jax.random.PRNGKey(0)
    kp, kx, kh1, kc1, kh2, kc2, kxs = jax.random.split(key, 7)

    B, T = 8, 12           # T=12 with tc=8 also exercises the padded-tail masking
    H = HIDDEN
    x = jax.random.normal(kx, (B, 1), jnp.float32)
    h_t = jax.random.normal(kh1, (B, H), jnp.float32)
    c_t = jax.random.normal(kc1, (B, H), jnp.float32)
    h_t2 = jax.random.normal(kh2, (B, H), jnp.float32)
    c_t2 = jax.random.normal(kc2, (B, H), jnp.float32)

    params = init_params(kp)
    packed = pack_params(params)

    # --- single timestep (== Sequence.forward) ------------------------------
    got = sequence_forward(x, h_t, c_t, h_t2, c_t2, packed)
    got = jax.block_until_ready(got)
    want = _reference_step(x, h_t, c_t, h_t2, c_t2, params)
    for g_, w_ in zip(got, want):
        assert g_.shape == w_.shape, (g_.shape, w_.shape)
        # bf16 matmul operands vs full-f32 reference -> loose-ish tolerance
        assert jnp.allclose(g_, w_, atol=3e-2, rtol=3e-2), "single-step mismatch"

    # --- T timesteps inside one pallas_call (Tc=8 per grid step) ------------
    xs = jax.random.normal(kxs, (T, B, 1), jnp.float32)
    got_s = sequence_forward_scan(xs, h_t, c_t, h_t2, c_t2, packed, tc=8)
    got_s = jax.block_until_ready(got_s)

    h1r, c1r, h2r, c2r = h_t, c_t, h_t2, c_t2
    outs_list = []
    for t in range(T):
        o_, h1r, c1r, h2r, c2r = _reference_step(xs[t], h1r, c1r, h2r, c2r, params)
        outs_list.append(o_)
    want_s = (jnp.stack(outs_list, axis=0), h1r, c1r, h2r, c2r)
    for g_, w_ in zip(got_s, want_s):
        assert g_.shape == w_.shape, (g_.shape, w_.shape)
        # bf16 rounding compounds across the recurrence -> looser tolerance
        assert jnp.allclose(g_, w_, atol=6e-2, rtol=6e-2), "scan mismatch"

    print("KERNEL_OK")
</pallas_src>

<mosaic_0001>
module attributes {stable_mosaic.version = 11 : i64} {
  func.func @_step_kernel(%arg0: memref<8x1xf32, #tpu.memory_space<vmem>>, %arg1: memref<8x128xf32, #tpu.memory_space<vmem>>, %arg2: memref<8x128xf32, #tpu.memory_space<vmem>>, %arg3: memref<8x128xf32, #tpu.memory_space<vmem>>, %arg4: memref<8x128xf32, #tpu.memory_space<vmem>>, %arg5: memref<1x512xf32, #tpu.memory_space<vmem>>, %arg6: memref<128x512xbf16, #tpu.memory_space<vmem>>, %arg7: memref<1x512xf32, #tpu.memory_space<vmem>>, %arg8: memref<256x512xbf16, #tpu.memory_space<vmem>>, %arg9: memref<1x512xf32, #tpu.memory_space<vmem>>, %arg10: memref<1x128xf32, #tpu.memory_space<vmem>>, %arg11: memref<1x1xf32, #tpu.memory_space<vmem>>, %arg12: memref<8x128xf32, #tpu.memory_space<vmem>>, %arg13: memref<8x128xf32, #tpu.memory_space<vmem>>, %arg14: memref<8x128xf32, #tpu.memory_space<vmem>>, %arg15: memref<8x128xf32, #tpu.memory_space<vmem>>, %arg16: memref<8x128xf32, #tpu.memory_space<vmem>>) attributes {dimension_semantics = [], scalar_prefetch = 0 : i64, scratch_operands = 0 : i64, tpu.core_type = #tpu.core_type<tc>} {
    %c0 = arith.constant 0 : index
    %c0_0 = arith.constant 0 : index
    %0 = vector.load %arg0[%c0, %c0_0] : memref<8x1xf32, #tpu.memory_space<vmem>>, vector<8x1xf32>
    %c0_1 = arith.constant 0 : index
    %c0_2 = arith.constant 0 : index
    %1 = vector.load %arg1[%c0_1, %c0_2] : memref<8x128xf32, #tpu.memory_space<vmem>>, vector<8x128xf32>
    %c0_3 = arith.constant 0 : index
    %c0_4 = arith.constant 0 : index
    %2 = vector.load %arg2[%c0_3, %c0_4] : memref<8x128xf32, #tpu.memory_space<vmem>>, vector<8x128xf32>
    %c0_5 = arith.constant 0 : index
    %c0_6 = arith.constant 0 : index
    %3 = vector.load %arg3[%c0_5, %c0_6] : memref<8x128xf32, #tpu.memory_space<vmem>>, vector<8x128xf32>
    %c0_7 = arith.constant 0 : index
    %c0_8 = arith.constant 0 : index
    %4 = vector.load %arg4[%c0_7, %c0_8] : memref<8x128xf32, #tpu.memory_space<vmem>>, vector<8x128xf32>
    %c0_9 = arith.constant 0 : index
    %c0_10 = arith.constant 0 : index
    %5 = vector.load %arg5[%c0_9, %c0_10] : memref<1x512xf32, #tpu.memory_space<vmem>>, vector<1x512xf32>
    %c0_11 = arith.constant 0 : index
    %c0_12 = arith.constant 0 : index
    %6 = vector.load %arg6[%c0_11, %c0_12] : memref<128x512xbf16, #tpu.memory_space<vmem>>, vector<128x512xbf16>
    %c0_13 = arith.constant 0 : index
    %c0_14 = arith.constant 0 : index
    %7 = vector.load %arg7[%c0_13, %c0_14] : memref<1x512xf32, #tpu.memory_space<vmem>>, vector<1x512xf32>
    %c0_15 = arith.constant 0 : index
    %c0_16 = arith.constant 0 : index
    %8 = vector.load %arg8[%c0_15, %c0_16] : memref<256x512xbf16, #tpu.memory_space<vmem>>, vector<256x512xbf16>
    %c0_17 = arith.constant 0 : index
    %c0_18 = arith.constant 0 : index
    %9 = vector.load %arg9[%c0_17, %c0_18] : memref<1x512xf32, #tpu.memory_space<vmem>>, vector<1x512xf32>
    %c0_19 = arith.constant 0 : index
    %c0_20 = arith.constant 0 : index
    %10 = vector.load %arg10[%c0_19, %c0_20] : memref<1x128xf32, #tpu.memory_space<vmem>>, vector<1x128xf32>
    %c0_21 = arith.constant 0 : index
    %c0_22 = arith.constant 0 : index
    %11 = vector.load %arg11[%c0_21, %c0_22] : memref<1x1xf32, #tpu.memory_space<vmem>>, vector<1x1xf32>
    %12 = vector.broadcast %0 : vector<8x1xf32> to vector<8x512xf32>
    %13 = vector.broadcast %5 : vector<1x512xf32> to vector<8x512xf32>
    %14 = arith.mulf %12, %13 : vector<8x512xf32>
    %15 = arith.truncf %1 : vector<8x128xf32> to vector<8x128xbf16>
    %cst = arith.constant dense<0.000000e+00> : vector<8x512xf32>
    %16 = tpu.matmul %15, %6, %cst {dimension_numbers = #tpu.dot_dimension_numbers<[1], [0], [0], [1], [0, 0, 1, 1], [], []>} : vector<8x128xbf16>, vector<128x512xbf16>, vector<8x512xf32> -> vector<8x512xf32>
    %17 = arith.addf %14, %16 : vector<8x512xf32>
    %18 = vector.broadcast %7 : vector<1x512xf32> to vector<8x512xf32>
    %19 = arith.addf %17, %18 : vector<8x512xf32>
    %20 = vector.extract_strided_slice %19 {offsets = [0, 0], sizes = [8, 128], strides = [1, 1]} : vector<8x512xf32> to vector<8x128xf32>
    %cst_23 = arith.constant 5.000000e-01 : f32
    %21 = vector.broadcast %cst_23 : f32 to vector<8x128xf32>
    %22 = arith.mulf %21, %20 : vector<8x128xf32>
    %23 = math.tanh %22 : vector<8x128xf32>
    %cst_24 = arith.constant 5.000000e-01 : f32
    %24 = vector.broadcast %cst_24 : f32 to vector<8x128xf32>
    %25 = arith.mulf %24, %23 : vector<8x128xf32>
    %cst_25 = arith.constant 5.000000e-01 : f32
    %26 = vector.broadcast %cst_25 : f32 to vector<8x128xf32>
    %27 = arith.addf %25, %26 : vector<8x128xf32>
    %28 = vector.extract_strided_slice %19 {offsets = [0, 128], sizes = [8, 128], strides = [1, 1]} : vector<8x512xf32> to vector<8x128xf32>
    %cst_26 = arith.constant 5.000000e-01 : f32
    %29 = vector.broadcast %cst_26 : f32 to vector<8x128xf32>
    %30 = arith.mulf %29, %28 : vector<8x128xf32>
    %31 = math.tanh %30 : vector<8x128xf32>
    %cst_27 = arith.constant 5.000000e-01 : f32
    %32 = vector.broadcast %cst_27 : f32 to vector<8x128xf32>
    %33 = arith.mulf %32, %31 : vector<8x128xf32>
    %cst_28 = arith.constant 5.000000e-01 : f32
    %34 = vector.broadcast %cst_28 : f32 to vector<8x128xf32>
    %35 = arith.addf %33, %34 : vector<8x128xf32>
    %36 = vector.extract_strided_slice %19 {offsets = [0, 256], sizes = [8, 128], strides = [1, 1]} : vector<8x512xf32> to vector<8x128xf32>
    %37 = math.tanh %36 : vector<8x128xf32>
    %38 = vector.extract_strided_slice %19 {offsets = [0, 384], sizes = [8, 128], strides = [1, 1]} : vector<8x512xf32> to vector<8x128xf32>
    %cst_29 = arith.constant 5.000000e-01 : f32
    %39 = vector.broadcast %cst_29 : f32 to vector<8x128xf32>
    %40 = arith.mulf %39, %38 : vector<8x128xf32>
    %41 = math.tanh %40 : vector<8x128xf32>
    %cst_30 = arith.constant 5.000000e-01 : f32
    %42 = vector.broadcast %cst_30 : f32 to vector<8x128xf32>
    %43 = arith.mulf %42, %41 : vector<8x128xf32>
    %cst_31 = arith.constant 5.000000e-01 : f32
    %44 = vector.broadcast %cst_31 : f32 to vector<8x128xf32>
    %45 = arith.addf %43, %44 : vector<8x128xf32>
    %46 = arith.mulf %35, %2 : vector<8x128xf32>
    %47 = arith.mulf %27, %37 : vector<8x128xf32>
    %48 = arith.addf %46, %47 : vector<8x128xf32>
    %49 = math.tanh %48 : vector<8x128xf32>
    %50 = arith.mulf %45, %49 : vector<8x128xf32>
    %51 = tpu.concatenate %50, %3 in 1 : vector<8x128xf32>, vector<8x128xf32> -> vector<8x256xf32>
    %52 = arith.truncf %51 : vector<8x256xf32> to vector<8x256xbf16>
    %cst_32 = arith.constant dense<0.000000e+00> : vector<8x512xf32>
    %53 = tpu.matmul %52, %8, %cst_32 {dimension_numbers = #tpu.dot_dimension_numbers<[1], [0], [0], [1], [0, 0, 1, 1], [], []>} : vector<8x256xbf16>, vector<256x512xbf16>, vector<8x512xf32> -> vector<8x512xf32>
    %54 = vector.broadcast %9 : vector<1x512xf32> to vector<8x512xf32>
    %55 = arith.addf %53, %54 : vector<8x512xf32>
    %56 = vector.extract_strided_slice %55 {offsets = [0, 0], sizes = [8, 128], strides = [1, 1]} : vector<8x512xf32> to vector<8x128xf32>
    %cst_33 = arith.constant 5.000000e-01 : f32
    %57 = vector.broadcast %cst_33 : f32 to vector<8x128xf32>
    %58 = arith.mulf %57, %56 : vector<8x128xf32>
    %59 = math.tanh %58 : vector<8x128xf32>
    %cst_34 = arith.constant 5.000000e-01 : f32
    %60 = vector.broadcast %cst_34 : f32 to vector<8x128xf32>
    %61 = arith.mulf %60, %59 : vector<8x128xf32>
    %cst_35 = arith.constant 5.000000e-01 : f32
    %62 = vector.broadcast %cst_35 : f32 to vector<8x128xf32>
    %63 = arith.addf %61, %62 : vector<8x128xf32>
    %64 = vector.extract_strided_slice %55 {offsets = [0, 128], sizes = [8, 128], strides = [1, 1]} : vector<8x512xf32> to vector<8x128xf32>
    %cst_36 = arith.constant 5.000000e-01 : f32
    %65 = vector.broadcast %cst_36 : f32 to vector<8x128xf32>
    %66 = arith.mulf %65, %64 : vector<8x128xf32>
    %67 = math.tanh %66 : vector<8x128xf32>
    %cst_37 = arith.constant 5.000000e-01 : f32
    %68 = vector.broadcast %cst_37 : f32 to vector<8x128xf32>
    %69 = arith.mulf %68, %67 : vector<8x128xf32>
    %cst_38 = arith.constant 5.000000e-01 : f32
    %70 = vector.broadcast %cst_38 : f32 to vector<8x128xf32>
    %71 = arith.addf %69, %70 : vector<8x128xf32>
    %72 = vector.extract_strided_slice %55 {offsets = [0, 256], sizes = [8, 128], strides = [1, 1]} : vector<8x512xf32> to vector<8x128xf32>
    %73 = math.tanh %72 : vector<8x128xf32>
    %74 = vector.extract_strided_slice %55 {offsets = [0, 384], sizes = [8, 128], strides = [1, 1]} : vector<8x512xf32> to vector<8x128xf32>
    %cst_39 = arith.constant 5.000000e-01 : f32
    %75 = vector.broadcast %cst_39 : f32 to vector<8x128xf32>
    %76 = arith.mulf %75, %74 : vector<8x128xf32>
    %77 = math.tanh %76 : vector<8x128xf32>
    %cst_40 = arith.constant 5.000000e-01 : f32
    %78 = vector.broadcast %cst_40 : f32 to vector<8x128xf32>
    %79 = arith.mulf %78, %77 : vector<8x128xf32>
    %cst_41 = arith.constant 5.000000e-01 : f32
    %80 = vector.broadcast %cst_41 : f32 to vector<8x128xf32>
    %81 = arith.addf %79, %80 : vector<8x128xf32>
    %82 = arith.mulf %71, %4 : vector<8x128xf32>
    %83 = arith.mulf %63, %73 : vector<8x128xf32>
    %84 = arith.addf %82, %83 : vector<8x128xf32>
    %85 = math.tanh %84 : vector<8x128xf32>
    %86 = arith.mulf %81, %85 : vector<8x128xf32>
    %87 = vector.broadcast %10 : vector<1x128xf32> to vector<8x128xf32>
    %88 = arith.mulf %86, %87 : vector<8x128xf32>
    %cst_42 = arith.constant dense<0.000000e+00> : vector<8xf32>
    %89 = vector.multi_reduction <add>, %88, %cst_42 [1] : vector<8x128xf32> to vector<8xf32>
    %90 = vector.shape_cast %89 : vector<8xf32> to vector<8x1xf32>
    %91 = vector.broadcast %11 : vector<1x1xf32> to vector<8x1xf32>
    %92 = arith.addf %90, %91 : vector<8x1xf32>
    %93 = vector.shape_cast %92 : vector<8x1xf32> to vector<8x1xf32>
    %94 = vector.broadcast %93 : vector<8x1xf32> to vector<8x128xf32>
    %c0_43 = arith.constant 0 : index
    %c0_44 = arith.constant 0 : index
    %95 = vector.load %arg12[%c0_43, %c0_44] : memref<8x128xf32, #tpu.memory_space<vmem>>, vector<8x128xf32>
    tpu.vector_store %arg12[%c0_43, %c0_44], %94 {strides = array<i32>} : memref<8x128xf32, #tpu.memory_space<vmem>>, vector<8x128xf32>,
    %c0_45 = arith.constant 0 : index
    %c0_46 = arith.constant 0 : index
    %96 = vector.load %arg13[%c0_45, %c0_46] : memref<8x128xf32, #tpu.memory_space<vmem>>, vector<8x128xf32>
    tpu.vector_store %arg13[%c0_45, %c0_46], %50 {strides = array<i32>} : memref<8x128xf32, #tpu.memory_space<vmem>>, vector<8x128xf32>,
    %c0_47 = arith.constant 0 : index
    %c0_48 = arith.constant 0 : index
    %97 = vector.load %arg14[%c0_47, %c0_48] : memref<8x128xf32, #tpu.memory_space<vmem>>, vector<8x128xf32>
    tpu.vector_store %arg14[%c0_47, %c0_48], %48 {strides = array<i32>} : memref<8x128xf32, #tpu.memory_space<vmem>>, vector<8x128xf32>,
    %c0_49 = arith.constant 0 : index
    %c0_50 = arith.constant 0 : index
    %98 = vector.load %arg15[%c0_49, %c0_50] : memref<8x128xf32, #tpu.memory_space<vmem>>, vector<8x128xf32>
    tpu.vector_store %arg15[%c0_49, %c0_50], %86 {strides = array<i32>} : memref<8x128xf32, #tpu.memory_space<vmem>>, vector<8x128xf32>,
    %c0_51 = arith.constant 0 : index
    %c0_52 = arith.constant 0 : index
    %99 = vector.load %arg16[%c0_51, %c0_52] : memref<8x128xf32, #tpu.memory_space<vmem>>, vector<8x128xf32>
    tpu.vector_store %arg16[%c0_51, %c0_52], %84 {strides = array<i32>} : memref<8x128xf32, #tpu.memory_space<vmem>>, vector<8x128xf32>,
    return
  }
}

</mosaic_0001>

<llo_original>
// kernel: tpu_custom_call.1
$region0: #{tpu_custom_call.1}
  #allocation0 [shape = 'u32[]', space=smem, size = 0x4, offset = 0x4, fixed_abs, tag = 'smem constant byte address 0x4 - core index']
  #allocation1 [shape = 'u32[144,128]{1,0:T(1,128)}', space=vmem, size = 0x12000, scoped, tag = 'internal scratch']
  #allocation2 [shape = 'f32[1,1]{1,0:T(1,128)S(1)}', space=vmem, size = 0x200, scoped, tag = 'scoped memory for tpu_custom_call.1']
  %s0 = inlined_call_operand.vmem [shape: f32[8,1], index: 0, kind: input, shape index: {}]
  %s1 = inlined_call_operand.vmem [shape: f32[8,128], index: 1, kind: input, shape index: {}]
  %s2 = inlined_call_operand.vmem [shape: f32[8,128], index: 2, kind: input, shape index: {}]
  %s3 = inlined_call_operand.vmem [shape: f32[8,128], index: 3, kind: input, shape index: {}]
  %s4 = inlined_call_operand.hbm [shape: f32[8,128], index: 4, kind: input, shape index: {}]
  %s5 = inlined_call_operand.vmem [shape: f32[1,512], index: 5, kind: input, shape index: {}]
  %s6 = inlined_call_operand.hbm [shape: bf16[128,512], index: 6, kind: input, shape index: {}]
  %s7 = inlined_call_operand.vmem [shape: f32[1,512], index: 7, kind: input, shape index: {}]
  %s8 = inlined_call_operand.hbm [shape: bf16[256,512], index: 8, kind: input, shape index: {}]
  %s9 = inlined_call_operand.vmem [shape: f32[1,512], index: 9, kind: input, shape index: {}]
  %s10 = inlined_call_operand.vmem [shape: f32[1,128], index: 10, kind: input, shape index: {}]
  %s11 = inlined_call_operand.<no memory space> [shape: f32[1,1], index: 11, kind: input, shape index: {}]
  %s12 = inlined_call_operand.hbm [shape: f32[8,128], index: 12, kind: output, shape index: {0}]
  %s13 = inlined_call_operand.hbm [shape: f32[8,128], index: 13, kind: output, shape index: {1}]
  %s14 = inlined_call_operand.hbm [shape: f32[8,128], index: 14, kind: output, shape index: {2}]
  %s15 = inlined_call_operand.hbm [shape: f32[8,128], index: 15, kind: output, shape index: {3}]
  %s16 = inlined_call_operand.hbm [shape: f32[8,128], index: 16, kind: output, shape index: {4}]
  %17 = xla_tuple %s12, %s13, %s14, %s15, %s16
  %s18 = sld [smem:[#allocation0]]
  $region102: #{tpu_custom_call.1} parent=0
    _
  %s20 = ssub.s32 1, %s18
  %s21 = scalar_select 0, %s20, %s18
  %v22 = vstv %s11
  %23 = vst [vmem:[#allocation2] sm:$0x1] %v22
  $region1: #{tpu_custom_call.1} parent=0
    #allocation3 [shape = 'u8[4096]{0}', space=vmem, size = 0x1000, scoped, tag = 'input window, operand 4, single buffered']
    #allocation4 [shape = 's32[1]{0}', space=sflag, size = 0x4, scoped, tag = 'scoped memory for tpu_custom_call.1']
    #allocation5 [shape = 's32[1]{0}', space=sflag, size = 0x4, scoped, tag = 'scoped memory for tpu_custom_call.1']
    #allocation6 [shape = 'u8[131072]{0}', space=vmem, size = 0x20000, scoped, tag = 'input window, operand 6, single buffered']
    #allocation7 [shape = 's32[1]{0}', space=sflag, size = 0x4, scoped, tag = 'scoped memory for tpu_custom_call.1']
    #allocation8 [shape = 'u8[262144]{0}', space=vmem, size = 0x40000, scoped, tag = 'input window, operand 8, single buffered']
    #allocation9 [shape = 'u8[4096]{0}', space=vmem, size = 0x1000, scoped, tag = 'output window, operand 0, single buffered']
    #allocation10 [shape = 'u8[4096]{0}', space=vmem, size = 0x1000, scoped, tag = 'output window, operand 1, single buffered']
    #allocation11 [shape = 's32[1]{0}', space=sflag, size = 0x4, scoped, tag = 'scoped memory for tpu_custom_call.1']
    #allocation12 [shape = 'u8[4096]{0}', space=vmem, size = 0x1000, scoped, tag = 'output window, operand 2, single buffered']
    #allocation13 [shape = 'u8[4096]{0}', space=vmem, size = 0x1000, scoped, tag = 'output window, operand 3, single buffered']
    #allocation14 [shape = 's32[1]{0}', space=sflag, size = 0x4, scoped, tag = 'scoped memory for tpu_custom_call.1']
    #allocation15 [shape = 'u8[4096]{0}', space=vmem, size = 0x1000, scoped, tag = 'output window, operand 4, single buffered']
    %24 = vsyncpa [#allocation4], 0
    %25 = vsyncpa [#allocation7], 0
    %26 = vsyncpa [#allocation5], 0
    %27 = vsyncpa [#allocation11], 0
    %28 = vsyncpa [#allocation14], 0
    // Predicated region
    $region2: #{tpu_custom_call.1} parent=1 // pred_check
      _
    $region3: #{tpu_custom_call.1} parent=1 // pred_check_branch
      %30 = sbr.rel (0) target = $region5
    $region4: #{tpu_custom_call.1} parent=1 // pred_region
      _
    $region5: #{tpu_custom_call.1} parent=1 // pred_fallthru
      _
    // Predicated region
    $region6: #{tpu_custom_call.1} parent=1 // pred_check
      _
    $region7: #{tpu_custom_call.1} parent=1 // pred_check_branch
      %32 = sbr.rel (0) target = $region9
    $region8: #{tpu_custom_call.1} parent=1 // pred_region
      _
    $region9: #{tpu_custom_call.1} parent=1 // pred_fallthru
      _
    // Predicated region
    $region10: #{tpu_custom_call.1} parent=1 // pred_check
      _
    $region11: #{tpu_custom_call.1} parent=1 // pred_check_branch
      %34 = sbr.rel (0) target = $region13
    $region12: #{tpu_custom_call.1} parent=1 // pred_region
      _
    $region13: #{tpu_custom_call.1} parent=1 // pred_fallthru
      _
    // Predicated region
    $region14: #{tpu_custom_call.1} parent=1 // pred_check
      _
    $region15: #{tpu_custom_call.1} parent=1 // pred_check_branch
      %36 = sbr.rel (0) target = $region17
    $region16: #{tpu_custom_call.1} parent=1 // pred_region
      _
    $region17: #{tpu_custom_call.1} parent=1 // pred_fallthru
      _
    // Predicated region
    $region18: #{tpu_custom_call.1} parent=1 // pred_check
      _
    $region19: #{tpu_custom_call.1} parent=1 // pred_check_branch
      %38 = sbr.rel (0) target = $region21
    $region20: #{tpu_custom_call.1} parent=1 // pred_region
      %s40 = ssub.s32 128, 128
      %41 = vsyncadd [#allocation4], %s40
      %s43 = sshll.u32 [#allocation3], 4
      %s44 = int_to_ptr.vmem [resolvable:$true] %s43
      %46 = dma.hbm_to_vmem [thread:$0]  %s4, 128, %s44, [#allocation4]
    $region21: #{tpu_custom_call.1} parent=1 // pred_fallthru
      _
    // Predicated region
    $region22: #{tpu_custom_call.1} parent=1 // pred_check
      _
    $region23: #{tpu_custom_call.1} parent=1 // pred_check_branch
      %48 = sbr.rel (0) target = $region25
    $region24: #{tpu_custom_call.1} parent=1 // pred_region
      _
    $region25: #{tpu_custom_call.1} parent=1 // pred_fallthru
      _
    // Predicated region
    $region26: #{tpu_custom_call.1} parent=1 // pred_check
      _
    $region27: #{tpu_custom_call.1} parent=1 // pred_check_branch
      %50 = sbr.rel (0) target = $region29
    $region28: #{tpu_custom_call.1} parent=1 // pred_region
      %s52 = ssub.s32 4096, 4096
      %53 = vsyncadd [#allocation7], %s52
      %s54 = sshll.u32 [#allocation6], 4
      %s55 = int_to_ptr.vmem [resolvable:$true] %s54
      %60 = dma.hbm_to_vmem [thread:$0]  %s6, 4096, %s55, [#allocation7], 256, 256, 16
    $region29: #{tpu_custom_call.1} parent=1 // pred_fallthru
      _
    // Predicated region
    $region30: #{tpu_custom_call.1} parent=1 // pred_check
      _
    $region31: #{tpu_custom_call.1} parent=1 // pred_check_branch
      %62 = sbr.rel (0) target = $region33
    $region32: #{tpu_custom_call.1} parent=1 // pred_region
      _
    $region33: #{tpu_custom_call.1} parent=1 // pred_fallthru
      _
    // Predicated region
    $region34: #{tpu_custom_call.1} parent=1 // pred_check
      _
    $region35: #{tpu_custom_call.1} parent=1 // pred_check_branch
      %64 = sbr.rel (0) target = $region37
    $region36: #{tpu_custom_call.1} parent=1 // pred_region
      %s66 = ssub.s32 8192, 8192
      %67 = vsyncadd [#allocation7], %s66
      %s68 = sshll.u32 [#allocation8], 4
      %s69 = int_to_ptr.vmem [resolvable:$true] %s68
      %74 = dma.hbm_to_vmem [thread:$0]  %s8, 8192, %s69, [#allocation7], 256, 256, 16
    $region37: #{tpu_custom_call.1} parent=1 // pred_fallthru
      _
    // Predicated region
    $region38: #{tpu_custom_call.1} parent=1 // pred_check
      _
    $region39: #{tpu_custom_call.1} parent=1 // pred_check_branch
      %76 = sbr.rel (0) target = $region41
    $region40: #{tpu_custom_call.1} parent=1 // pred_region
      _
    $region41: #{tpu_custom_call.1} parent=1 // pred_fallthru
      _
    // Predicated region
    $region42: #{tpu_custom_call.1} parent=1 // pred_check
      _
    $region43: #{tpu_custom_call.1} parent=1 // pred_check_branch
      %78 = sbr.rel (0) target = $region45
    $region44: #{tpu_custom_call.1} parent=1 // pred_region
      _
    $region45: #{tpu_custom_call.1} parent=1 // pred_fallthru
      _
    // Predicated region
    $region46: #{tpu_custom_call.1} parent=1 // pred_check
      _
    $region47: #{tpu_custom_call.1} parent=1 // pred_check_branch
      %80 = sbr.rel (0) target = $region49
    $region48: #{tpu_custom_call.1} parent=1 // pred_region
      _
    $region49: #{tpu_custom_call.1} parent=1 // pred_fallthru
      _
    // Predicated region
    $region50: #{tpu_custom_call.1} parent=1 // pred_check
      _
    $region51: #{tpu_custom_call.1} parent=1 // pred_check_branch
      %82 = sbr.rel (0) target = $region53
    $region52: #{tpu_custom_call.1} parent=1 // pred_region
      %83 = dma.done [#allocation4], 128
    $region53: #{tpu_custom_call.1} parent=1 // pred_fallthru
      _
    // Predicated region
    $region54: #{tpu_custom_call.1} parent=1 // pred_check
      _
    $region55: #{tpu_custom_call.1} parent=1 // pred_check_branch
      %85 = sbr.rel (0) target = $region57
    $region56: #{tpu_custom_call.1} parent=1 // pred_region
      %86 = dma.done [#allocation7], 4096
    $region57: #{tpu_custom_call.1} parent=1 // pred_fallthru
      _
    // Predicated region
    $region58: #{tpu_custom_call.1} parent=1 // pred_check
      _
    $region59: #{tpu_custom_call.1} parent=1 // pred_check_branch
      %88 = sbr.rel (0) target = $region61
    $region60: #{tpu_custom_call.1} parent=1 // pred_region
      %89 = dma.done [#allocation7], 8192
    $region61: #{tpu_custom_call.1} parent=1 // pred_fallthru
      _
    %v91 = vld [vmem:[%s0] sm:$0xff]
    %v92 = vld [vmem:[%s1] sm:$0xff]
    %v93 = vld [vmem:[%s2] sm:$0xff]
    %v94 = vld [vmem:[%s3] sm:$0xff]
    %v95 = vld [vmem:[#allocation3] sm:$0xff]
    %v96 = vld [vmem:[%s5] sm:$0xf]
    %v97 = vld [vmem:[#allocation6] sm:$0xff]
    %v98 = vld [vmem:[#allocation6 + $0x8] sm:$0xff]
    %v99 = vld [vmem:[#allocation6 + $0x10] sm:$0xff]
    %v100 = vld [vmem:[#allocation6 + $0x18] sm:$0xff]
    %v101 = vld [vmem:[#allocation6 + $0x20] sm:$0xff]
    %v102 = vld [vmem:[#allocation6 + $0x28] sm:$0xff]
    %v103 = vld [vmem:[#allocation6 + $0x30] sm:$0xff]
    %v104 = vld [vmem:[#allocation6 + $0x38] sm:$0xff]
    %v105 = vld [vmem:[#allocation6 + $0x40] sm:$0xff]
    %v106 = vld [vmem:[#allocation6 + $0x48] sm:$0xff]
    %v107 = vld [vmem:[#allocation6 + $0x50] sm:$0xff]
    %v108 = vld [vmem:[#allocation6 + $0x58] sm:$0xff]
    %v109 = vld [vmem:[#allocation6 + $0x60] sm:$0xff]
    %v110 = vld [vmem:[#allocation6 + $0x68] sm:$0xff]
    %v111 = vld [vmem:[#allocation6 + $0x70] sm:$0xff]
    %v112 = vld [vmem:[#allocation6 + $0x78] sm:$0xff]
    %v113 = vld [vmem:[#allocation6 + $0x80] sm:$0xff]
    %v114 = vld [vmem:[#allocation6 + $0x88] sm:$0xff]
    %v115 = vld [vmem:[#allocation6 + $0x90] sm:$0xff]
    %v116 = vld [vmem:[#allocation6 + $0x98] sm:$0xff]
    %v117 = vld [vmem:[#allocation6 + $0xa0] sm:$0xff]
    %v118 = vld [vmem:[#allocation6 + $0xa8] sm:$0xff]
    %v119 = vld [vmem:[#allocation6 + $0xb0] sm:$0xff]
    %v120 = vld [vmem:[#allocation6 + $0xb8] sm:$0xff]
    %v121 = vld [vmem:[#allocation6 + $0xc0] sm:$0xff]
    %v122 = vld [vmem:[#allocation6 + $0xc8] sm:$0xff]
    %v123 = vld [vmem:[#allocation6 + $0xd0] sm:$0xff]
    %v124 = vld [vmem:[#allocation6 + $0xd8] sm:$0xff]
    %v125 = vld [vmem:[#allocation6 + $0xe0] sm:$0xff]
    %v126 = vld [vmem:[#allocation6 + $0xe8] sm:$0xff]
    %v127 = vld [vmem:[#allocation6 + $0xf0] sm:$0xff]
    %v128 = vld [vmem:[#allocation6 + $0xf8] sm:$0xff]
    %v129 = vld [vmem:[%s7] sm:$0xf]
    %v130 = vld [vmem:[#allocation8] sm:$0xff]
    %v131 = vld [vmem:[#allocation8 + $0x8] sm:$0xff]
    %v132 = vld [vmem:[#allocation8 + $0x10] sm:$0xff]
    %v133 = vld [vmem:[#allocation8 + $0x18] sm:$0xff]
    %v134 = vld [vmem:[#allocation8 + $0x20] sm:$0xff]
    %v135 = vld [vmem:[#allocation8 + $0x28] sm:$0xff]
    %v136 = vld [vmem:[#allocation8 + $0x30] sm:$0xff]
    %v137 = vld [vmem:[#allocation8 + $0x38] sm:$0xff]
    %v138 = vld [vmem:[#allocation8 + $0x40] sm:$0xff]
    %v139 = vld [vmem:[#allocation8 + $0x48] sm:$0xff]
    %v140 = vld [vmem:[#allocation8 + $0x50] sm:$0xff]
    %v141 = vld [vmem:[#allocation8 + $0x58] sm:$0xff]
    %v142 = vld [vmem:[#allocation8 + $0x60] sm:$0xff]
    %v143 = vld [vmem:[#allocation8 + $0x68] sm:$0xff]
    %v144 = vld [vmem:[#allocation8 + $0x70] sm:$0xff]
    %v145 = vld [vmem:[#allocation8 + $0x78] sm:$0xff]
    %v146 = vld [vmem:[#allocation8 + $0x80] sm:$0xff]
    %v147 = vld [vmem:[#allocation8 + $0x88] sm:$0xff]
    %v148 = vld [vmem:[#allocation8 + $0x90] sm:$0xff]
    %v149 = vld [vmem:[#allocation8 + $0x98] sm:$0xff]
    %v150 = vld [vmem:[#allocation8 + $0xa0] sm:$0xff]
    %v151 = vld [vmem:[#allocation8 + $0xa8] sm:$0xff]
    %v152 = vld [vmem:[#allocation8 + $0xb0] sm:$0xff]
    %v153 = vld [vmem:[#allocation8 + $0xb8] sm:$0xff]
    %v154 = vld [vmem:[#allocation8 + $0xc0] sm:$0xff]
    %v155 = vld [vmem:[#allocation8 + $0xc8] sm:$0xff]
    %v156 = vld [vmem:[#allocation8 + $0xd0] sm:$0xff]
    %v157 = vld [vmem:[#allocation8 + $0xd8] sm:$0xff]
    %v158 = vld [vmem:[#allocation8 + $0xe0] sm:$0xff]
    %v159 = vld [vmem:[#allocation8 + $0xe8] sm:$0xff]
    %v160 = vld [vmem:[#allocation8 + $0xf0] sm:$0xff]
    %v161 = vld [vmem:[#allocation8 + $0xf8] sm:$0xff]
    %v162 = vld [vmem:[#allocation8 + $0x100] sm:$0xff]
    %v163 = vld [vmem:[#allocation8 + $0x108] sm:$0xff]
    %v164 = vld [vmem:[#allocation8 + $0x110] sm:$0xff]
    %v165 = vld [vmem:[#allocation8 + $0x118] sm:$0xff]
    %v166 = vld [vmem:[#allocation8 + $0x120] sm:$0xff]
    %v167 = vld [vmem:[#allocation8 + $0x128] sm:$0xff]
    %v168 = vld [vmem:[#allocation8 + $0x130] sm:$0xff]
    %v169 = vld [vmem:[#allocation8 + $0x138] sm:$0xff]
    %v170 = vld [vmem:[#allocation8 + $0x140] sm:$0xff]
    %v171 = vld [vmem:[#allocation8 + $0x148] sm:$0xff]
    %v172 = vld [vmem:[#allocation8 + $0x150] sm:$0xff]
    %v173 = vld [vmem:[#allocation8 + $0x158] sm:$0xff]
    %v174 = vld [vmem:[#allocation8 + $0x160] sm:$0xff]
    %v175 = vld [vmem:[#allocation8 + $0x168] sm:$0xff]
    %v176 = vld [vmem:[#allocation8 + $0x170] sm:$0xff]
    %v177 = vld [vmem:[#allocation8 + $0x178] sm:$0xff]
    %v178 = vld [vmem:[#allocation8 + $0x180] sm:$0xff]
    %v179 = vld [vmem:[#allocation8 + $0x188] sm:$0xff]
    %v180 = vld [vmem:[#allocation8 + $0x190] sm:$0xff]
    %v181 = vld [vmem:[#allocation8 + $0x198] sm:$0xff]
    %v182 = vld [vmem:[#allocation8 + $0x1a0] sm:$0xff]
    %v183 = vld [vmem:[#allocation8 + $0x1a8] sm:$0xff]
    %v184 = vld [vmem:[#allocation8 + $0x1b0] sm:$0xff]
    %v185 = vld [vmem:[#allocation8 + $0x1b8] sm:$0xff]
    %v186 = vld [vmem:[#allocation8 + $0x1c0] sm:$0xff]
    %v187 = vld [vmem:[#allocation8 + $0x1c8] sm:$0xff]
    %v188 = vld [vmem:[#allocation8 + $0x1d0] sm:$0xff]
    %v189 = vld [vmem:[#allocation8 + $0x1d8] sm:$0xff]
    %v190 = vld [vmem:[#allocation8 + $0x1e0] sm:$0xff]
    %v191 = vld [vmem:[#allocation8 + $0x1e8] sm:$0xff]
    %v192 = vld [vmem:[#allocation8 + $0x1f0] sm:$0xff]
    %v193 = vld [vmem:[#allocation8 + $0x1f8] sm:$0xff]
    %v194 = vld [vmem:[%s9] sm:$0xf]
    %v195 = vld [vmem:[%s10] sm:$0x1]
    %v196 = vld [vmem:[#allocation2] sm:$0x1]
    %198 = vset.pattern.permute.xlu0 0
    %199 = vperm.xlu0 %198, %v91
    %v200 = vpop.permute.xlu0 %199
    %v203 = vlaneseq
    %v204 = vshrl.u32 %v203, 7
    %v205 = vsub.s32 0, %v204
    %v206 = vrot.slane %v96, %v205
    %v207 = vlaneseq
    %v208 = vshrl.u32 %v207, 7
    %v209 = vsub.s32 1, %v208
    %v210 = vrot.slane %v96, %v209
    %v211 = vlaneseq
    %v212 = vshrl.u32 %v211, 7
    %v213 = vsub.s32 2, %v212
    %v214 = vrot.slane %v96, %v213
    %v215 = vlaneseq
    %v216 = vshrl.u32 %v215, 7
    %v217 = vsub.s32 3, %v216
    %v218 = vrot.slane %v96, %v217
    %v223 = vmul.f32 %v200, %v206
    %v224 = vmul.f32 %v200, %v210
    %v225 = vmul.f32 %v200, %v214
    %v226 = vmul.f32 %v200, %v218
    %v227 = vpack.c.bf16 %v92, %v92
    %v260 = vunpack.c.l.b16 %v97
    %v261 = vunpack.c.h.b16 %v97
    %v262 = vunpack.c.l.b16 %v98
    %v263 = vunpack.c.h.b16 %v98
    %v264 = vunpack.c.l.b16 %v99
    %v265 = vunpack.c.h.b16 %v99
    %v266 = vunpack.c.l.b16 %v100
    %v267 = vunpack.c.h.b16 %v100
    %v268 = vunpack.c.l.b16 %v101
    %v269 = vunpack.c.h.b16 %v101
    %v270 = vunpack.c.l.b16 %v102
    %v271 = vunpack.c.h.b16 %v102
    %v272 = vunpack.c.l.b16 %v103
    %v273 = vunpack.c.h.b16 %v103
    %v274 = vunpack.c.l.b16 %v104
    %v275 = vunpack.c.h.b16 %v104
    %v276 = vunpack.c.l.b16 %v105
    %v277 = vunpack.c.h.b16 %v105
    %v278 = vunpack.c.l.b16 %v106
    %v279 = vunpack.c.h.b16 %v106
    %v280 = vunpack.c.l.b16 %v107
    %v281 = vunpack.c.h.b16 %v107
    %v282 = vunpack.c.l.b16 %v108
    %v283 = vunpack.c.h.b16 %v108
    %v284 = vunpack.c.l.b16 %v109
    %v285 = vunpack.c.h.b16 %v109
    %v286 = vunpack.c.l.b16 %v110
    %v287 = vunpack.c.h.b16 %v110
    %v288 = vunpack.c.l.b16 %v111
    %v289 = vunpack.c.h.b16 %v111
    %v290 = vunpack.c.l.b16 %v112
    %v291 = vunpack.c.h.b16 %v112
    %v292 = vunpack.c.l.b16 %v113
    %v293 = vunpack.c.h.b16 %v113
    %v294 = vunpack.c.l.b16 %v114
    %v295 = vunpack.c.h.b16 %v114
    %v296 = vunpack.c.l.b16 %v115
    %v297 = vunpack.c.h.b16 %v115
    %v298 = vunpack.c.l.b16 %v116
    %v299 = vunpack.c.h.b16 %v116
    %v300 = vunpack.c.l.b16 %v117
    %v301 = vunpack.c.h.b16 %v117
    %v302 = vunpack.c.l.b16 %v118
    %v303 = vunpack.c.h.b16 %v118
    %v304 = vunpack.c.l.b16 %v119
    %v305 = vunpack.c.h.b16 %v119
    %v306 = vunpack.c.l.b16 %v120
    %v307 = vunpack.c.h.b16 %v120
    %v308 = vunpack.c.l.b16 %v121
    %v309 = vunpack.c.h.b16 %v121
    %v310 = vunpack.c.l.b16 %v122
    %v311 = vunpack.c.h.b16 %v122
    %v312 = vunpack.c.l.b16 %v123
    %v313 = vunpack.c.h.b16 %v123
    %v314 = vunpack.c.l.b16 %v124
    %v315 = vunpack.c.h.b16 %v124
    %v316 = vunpack.c.l.b16 %v125
    %v317 = vunpack.c.h.b16 %v125
    %v318 = vunpack.c.l.b16 %v126
    %v319 = vunpack.c.h.b16 %v126
    %v320 = vunpack.c.l.b16 %v127
    %v321 = vunpack.c.h.b16 %v127
    %v322 = vunpack.c.l.b16 %v128
    %v323 = vunpack.c.h.b16 %v128
    %v324 = vpack.c.b16 %v264, %v260
    %v325 = vpack.c.b16 %v265, %v261
    %v326 = vpack.c.b16 %v266, %v262
    %v327 = vpack.c.b16 %v267, %v263
    %v328 = vpack.c.b16 %v272, %v268
    %v329 = vpack.c.b16 %v273, %v269
    %v330 = vpack.c.b16 %v274, %v270
    %v331 = vpack.c.b16 %v275, %v271
    %v332 = vpack.c.b16 %v280, %v276
    %v333 = vpack.c.b16 %v281, %v277
    %v334 = vpack.c.b16 %v282, %v278
    %v335 = vpack.c.b16 %v283, %v279
    %v336 = vpack.c.b16 %v288, %v284
    %v337 = vpack.c.b16 %v289, %v285
    %v338 = vpack.c.b16 %v290, %v286
    %v339 = vpack.c.b16 %v291, %v287
    %v340 = vpack.c.b16 %v296, %v292
    %v341 = vpack.c.b16 %v297, %v293
    %v342 = vpack.c.b16 %v298, %v294
    %v343 = vpack.c.b16 %v299, %v295
    %v344 = vpack.c.b16 %v304, %v300
    %v345 = vpack.c.b16 %v305, %v301
    %v346 = vpack.c.b16 %v306, %v302
    %v347 = vpack.c.b16 %v307, %v303
    %v348 = vpack.c.b16 %v312, %v308
    %v349 = vpack.c.b16 %v313, %v309
    %v350 = vpack.c.b16 %v314, %v310
    %v351 = vpack.c.b16 %v315, %v311
    %v352 = vpack.c.b16 %v320, %v316
    %v353 = vpack.c.b16 %v321, %v317
    %v354 = vpack.c.b16 %v322, %v318
    %v355 = vpack.c.b16 %v323, %v319
    %388 = vmatprep.subr.bf16.mxu0 %v325
    %389 = vmatpush1.bf16.msra.mxu0 %v324
    %390 = vmatprep.subr.bf16.mxu0 %v329
    %391 = vmatpush1.bf16.msra.mxu0 %v328
    %392 = vmatprep.subr.bf16.mxu0 %v333
    %393 = vmatpush1.bf16.msra.mxu0 %v332
    %394 = vmatprep.subr.bf16.mxu0 %v337
    %395 = vmatpush1.bf16.msra.mxu0 %v336
    %396 = vmatprep.subr.bf16.mxu0 %v341
    %397 = vmatpush1.bf16.msra.mxu0 %v340
    %398 = vmatprep.subr.bf16.mxu0 %v345
    %399 = vmatpush1.bf16.msra.mxu0 %v344
    %400 = vmatprep.subr.bf16.mxu0 %v349
    %401 = vmatpush1.bf16.msra.mxu0 %v348
    %402 = vmatprep.subr.bf16.mxu0 %v353
    %403 = vmatpush1.bf16.msra.mxu0 %v352
    %404 = vmatprep.subr.bf16.mxu0 0
    %405 = vmatpush1.bf16.msra.mxu0 0
    %406 = vmatprep.subr.bf16.mxu0 0
    %407 = vmatpush1.bf16.msra.mxu0 0
    %408 = vmatprep.subr.bf16.mxu0 0
    %409 = vmatpush1.bf16.msra.mxu0 0
    %410 = vmatprep.subr.bf16.mxu0 0
    %411 = vmatpush1.bf16.msra.mxu0 0
    %412 = vmatprep.subr.bf16.mxu0 0
    %413 = vmatpush1.bf16.msra.mxu0 0
    %414 = vmatprep.subr.bf16.mxu0 0
    %415 = vmatpush1.bf16.msra.mxu0 0
    %416 = vmatprep.subr.bf16.mxu0 0
    %417 = vmatpush1.bf16.msra.mxu0 0
    %418 = vmatprep.subr.bf16.mxu0 0
    %419 = vmatpush1.bf16.msra.mxu0 0
    %420 = vmatprep.mubr.bf16.mxu0 0
    %421 = vmatmul.mubr.bf16.gmra.mrb[0].mxu0 %v227
    %v422 = vpop.f32.mrb[0].mxu0
    %v423 = vadd.f32 0.0, %v422
    %v424 = vpop.f32.mrb[0].mxu0
    %v425 = vadd.f32 0.0, %v424
    %v426 = vpop.f32.mrb[0].mxu0
    %v427 = vpop.f32.mrb[0].mxu0
    %428 = vdwg.mxu0
    %429 = vmatprep.subr.bf16.mxu0 %v327
    %430 = vmatpush1.bf16.msra.mxu0 %v326
    %431 = vmatprep.subr.bf16.mxu0 %v331
    %432 = vmatpush1.bf16.msra.mxu0 %v330
    %433 = vmatprep.subr.bf16.mxu0 %v335
    %434 = vmatpush1.bf16.msra.mxu0 %v334
    %435 = vmatprep.subr.bf16.mxu0 %v339
    %436 = vmatpush1.bf16.msra.mxu0 %v338
    %437 = vmatprep.subr.bf16.mxu0 %v343
    %438 = vmatpush1.bf16.msra.mxu0 %v342
    %439 = vmatprep.subr.bf16.mxu0 %v347
    %440 = vmatpush1.bf16.msra.mxu0 %v346
    %441 = vmatprep.subr.bf16.mxu0 %v351
    %442 = vmatpush1.bf16.msra.mxu0 %v350
    %443 = vmatprep.subr.bf16.mxu0 %v355
    %444 = vmatpush1.bf16.msra.mxu0 %v354
    %445 = vmatprep.subr.bf16.mxu0 0
    %446 = vmatpush1.bf16.msra.mxu0 0
    %447 = vmatprep.subr.bf16.mxu0 0
    %448 = vmatpush1.bf16.msra.mxu0 0
    %449 = vmatprep.subr.bf16.mxu0 0
    %450 = vmatpush1.bf16.msra.mxu0 0
    %451 = vmatprep.subr.bf16.mxu0 0
    %452 = vmatpush1.bf16.msra.mxu0 0
    %453 = vmatprep.subr.bf16.mxu0 0
    %454 = vmatpush1.bf16.msra.mxu0 0
    %455 = vmatprep.subr.bf16.mxu0 0
    %456 = vmatpush1.bf16.msra.mxu0 0
    %457 = vmatprep.subr.bf16.mxu0 0
    %458 = vmatpush1.bf16.msra.mxu0 0
    %459 = vmatprep.subr.bf16.mxu0 0
    %460 = vmatpush1.bf16.msra.mxu0 0
    %461 = vmatprep.mubr.bf16.mxu0 0
    %462 = vmatmul.mubr.bf16.gmra.mrb[0].mxu0 %v227
    %v463 = vpop.f32.mrb[0].mxu0
    %v464 = vadd.f32 0.0, %v463
    %v465 = vpop.f32.mrb[0].mxu0
    %v466 = vadd.f32 0.0, %v465
    %v467 = vpop.f32.mrb[0].mxu0
    %v468 = vpop.f32.mrb[0].mxu0
    %469 = vdwg.mxu0
    %v470 = vadd.f32 %v223, %v423
    %v471 = vadd.f32 %v224, %v425
    %v472 = vadd.f32 %v225, %v464
    %v473 = vadd.f32 %v226, %v466
    %v475 = vlaneseq
    %v476 = vshrl.u32 %v475, 7
    %v477 = vsub.s32 0, %v476
    %v478 = vrot.slane %v129, %v477
    %v479 = vlaneseq
    %v480 = vshrl.u32 %v479, 7
    %v481 = vsub.s32 1, %v480
    %v482 = vrot.slane %v129, %v481
    %v483 = vlaneseq
    %v484 = vshrl.u32 %v483, 7
    %v485 = vsub.s32 2, %v484
    %v486 = vrot.slane %v129, %v485
    %v487 = vlaneseq
    %v488 = vshrl.u32 %v487, 7
    %v489 = vsub.s32 3, %v488
    %v490 = vrot.slane %v129, %v489
    %v495 = vadd.f32 %v470, %v478
    %v496 = vadd.f32 %v471, %v482
    %v497 = vadd.f32 %v472, %v486
    %v498 = vadd.f32 %v473, %v490
    %v499 = vmul.f32 %v495, 0.5
    %v500 = vtanh.pop %v499
    %v501 = vmul.f32 %v500, 0.5
    %v502 = vadd.f32 %v501, 0.5
    %v503 = vmul.f32 %v496, 0.5
    %v504 = vtanh.pop %v503
    %v505 = vmul.f32 %v504, 0.5
    %v506 = vadd.f32 %v505, 0.5
    %v507 = vtanh.pop %v497
    %v508 = vmul.f32 %v498, 0.5
    %v509 = vtanh.pop %v508
    %v510 = vmul.f32 %v509, 0.5
    %v511 = vadd.f32 %v510, 0.5
    %v512 = vmul.f32 %v506, %v93
    %v513 = vmul.f32 %v502, %v507
    %v514 = vadd.f32 %v512, %v513
    %v515 = vtanh.pop %v514
    %v516 = vmul.f32 %v511, %v515
    %v517 = vpack.c.bf16 %v516, %v516
    %v518 = vpack.c.bf16 %v94, %v94
    %v520 = vlaneseq
    %v521 = vshrl.u32 %v520, 7
    %v522 = vsub.s32 0, %v521
    %v523 = vrot.slane %v194, %v522
    %v524 = vlaneseq
    %v525 = vshrl.u32 %v524, 7
    %v526 = vsub.s32 1, %v525
    %v527 = vrot.slane %v194, %v526
    %v528 = vlaneseq
    %v529 = vshrl.u32 %v528, 7
    %v530 = vsub.s32 2, %v529
    %v531 = vrot.slane %v194, %v530
    %v532 = vlaneseq
    %v533 = vshrl.u32 %v532, 7
    %v534 = vsub.s32 3, %v533
    %v535 = vrot.slane %v194, %v534
    %v604 = vunpack.c.l.b16 %v130
    %v605 = vunpack.c.h.b16 %v130
    %v606 = vunpack.c.l.b16 %v131
    %v607 = vunpack.c.h.b16 %v131
    %v608 = vunpack.c.l.b16 %v132
    %v609 = vunpack.c.h.b16 %v132
    %v610 = vunpack.c.l.b16 %v133
    %v611 = vunpack.c.h.b16 %v133
    %v612 = vunpack.c.l.b16 %v134
    %v613 = vunpack.c.h.b16 %v134
    %v614 = vunpack.c.l.b16 %v135
    %v615 = vunpack.c.h.b16 %v135
    %v616 = vunpack.c.l.b16 %v136
    %v617 = vunpack.c.h.b16 %v136
    %v618 = vunpack.c.l.b16 %v137
    %v619 = vunpack.c.h.b16 %v137
    %v620 = vunpack.c.l.b16 %v138
    %v621 = vunpack.c.h.b16 %v138
    %v622 = vunpack.c.l.b16 %v139
    %v623 = vunpack.c.h.b16 %v139
    %v624 = vunpack.c.l.b16 %v140
    %v625 = vunpack.c.h.b16 %v140
    %v626 = vunpack.c.l.b16 %v141
    %v627 = vunpack.c.h.b16 %v141
    %v628 = vunpack.c.l.b16 %v142
    %v629 = vunpack.c.h.b16 %v142
    %v630 = vunpack.c.l.b16 %v143
    %v631 = vunpack.c.h.b16 %v143
    %v632 = vunpack.c.l.b16 %v144
    %v633 = vunpack.c.h.b16 %v144
    %v634 = vunpack.c.l.b16 %v145
    %v635 = vunpack.c.h.b16 %v145
    %v636 = vunpack.c.l.b16 %v146
    %v637 = vunpack.c.h.b16 %v146
    %v638 = vunpack.c.l.b16 %v147
    %v639 = vunpack.c.h.b16 %v147
    %v640 = vunpack.c.l.b16 %v148
    %v641 = vunpack.c.h.b16 %v148
    %v642 = vunpack.c.l.b16 %v149
    %v643 = vunpack.c.h.b16 %v149
    %v644 = vunpack.c.l.b16 %v150
    %v645 = vunpack.c.h.b16 %v150
    %v646 = vunpack.c.l.b16 %v151
    %v647 = vunpack.c.h.b16 %v151
    %v648 = vunpack.c.l.b16 %v152
    %v649 = vunpack.c.h.b16 %v152
    %v650 = vunpack.c.l.b16 %v153
    %v651 = vunpack.c.h.b16 %v153
    %v652 = vunpack.c.l.b16 %v154
    %v653 = vunpack.c.h.b16 %v154
    %v654 = vunpack.c.l.b16 %v155
    %v655 = vunpack.c.h.b16 %v155
    %v656 = vunpack.c.l.b16 %v156
    %v657 = vunpack.c.h.b16 %v156
    %v658 = vunpack.c.l.b16 %v157
    %v659 = vunpack.c.h.b16 %v157
    %v660 = vunpack.c.l.b16 %v158
    %v661 = vunpack.c.h.b16 %v158
    %v662 = vunpack.c.l.b16 %v159
    %v663 = vunpack.c.h.b16 %v159
    %v664 = vunpack.c.l.b16 %v160
    %v665 = vunpack.c.h.b16 %v160
    %v666 = vunpack.c.l.b16 %v161
    %v667 = vunpack.c.h.b16 %v161
    %v668 = vunpack.c.l.b16 %v162
    %v669 = vunpack.c.h.b16 %v162
    %v670 = vunpack.c.l.b16 %v163
    %v671 = vunpack.c.h.b16 %v163
    %v672 = vunpack.c.l.b16 %v164
    %v673 = vunpack.c.h.b16 %v164
    %v674 = vunpack.c.l.b16 %v165
    %v675 = vunpack.c.h.b16 %v165
    %v676 = vunpack.c.l.b16 %v166
    %v677 = vunpack.c.h.b16 %v166
    %v678 = vunpack.c.l.b16 %v167
    %v679 = vunpack.c.h.b16 %v167
    %v680 = vunpack.c.l.b16 %v168
    %v681 = vunpack.c.h.b16 %v168
    %v682 = vunpack.c.l.b16 %v169
    %v683 = vunpack.c.h.b16 %v169
    %v684 = vunpack.c.l.b16 %v170
    %v685 = vunpack.c.h.b16 %v170
    %v686 = vunpack.c.l.b16 %v171
    %v687 = vunpack.c.h.b16 %v171
    %v688 = vunpack.c.l.b16 %v172
    %v689 = vunpack.c.h.b16 %v172
    %v690 = vunpack.c.l.b16 %v173
    %v691 = vunpack.c.h.b16 %v173
    %v692 = vunpack.c.l.b16 %v174
    %v693 = vunpack.c.h.b16 %v174
    %v694 = vunpack.c.l.b16 %v175
    %v695 = vunpack.c.h.b16 %v175
    %v696 = vunpack.c.l.b16 %v176
    %v697 = vunpack.c.h.b16 %v176
    %v698 = vunpack.c.l.b16 %v177
    %v699 = vunpack.c.h.b16 %v177
    %v700 = vunpack.c.l.b16 %v178
    %v701 = vunpack.c.h.b16 %v178
    %v702 = vunpack.c.l.b16 %v179
    %v703 = vunpack.c.h.b16 %v179
    %v704 = vunpack.c.l.b16 %v180
    %v705 = vunpack.c.h.b16 %v180
    %v706 = vunpack.c.l.b16 %v181
    %v707 = vunpack.c.h.b16 %v181
    %v708 = vunpack.c.l.b16 %v182
    %v709 = vunpack.c.h.b16 %v182
    %v710 = vunpack.c.l.b16 %v183
    %v711 = vunpack.c.h.b16 %v183
    %v712 = vunpack.c.l.b16 %v184
    %v713 = vunpack.c.h.b16 %v184
    %v714 = vunpack.c.l.b16 %v185
    %v715 = vunpack.c.h.b16 %v185
    %v716 = vunpack.c.l.b16 %v186
    %v717 = vunpack.c.h.b16 %v186
    %v718 = vunpack.c.l.b16 %v187
    %v719 = vunpack.c.h.b16 %v187
    %v720 = vunpack.c.l.b16 %v188
    %v721 = vunpack.c.h.b16 %v188
    %v722 = vunpack.c.l.b16 %v189
    %v723 = vunpack.c.h.b16 %v189
    %v724 = vunpack.c.l.b16 %v190
    %v725 = vunpack.c.h.b16 %v190
    %v726 = vunpack.c.l.b16 %v191
    %v727 = vunpack.c.h.b16 %v191
    %v728 = vunpack.c.l.b16 %v192
    %v729 = vunpack.c.h.b16 %v192
    %v730 = vunpack.c.l.b16 %v193
    %v731 = vunpack.c.h.b16 %v193
    %v732 = vpack.c.b16 %v608, %v604
    %v733 = vpack.c.b16 %v609, %v605
    %v734 = vpack.c.b16 %v610, %v606
    %v735 = vpack.c.b16 %v611, %v607
    %v736 = vpack.c.b16 %v616, %v612
    %v737 = vpack.c.b16 %v617, %v613
    %v738 = vpack.c.b16 %v618, %v614
    %v739 = vpack.c.b16 %v619, %v615
    %v740 = vpack.c.b16 %v624, %v620
    %v741 = vpack.c.b16 %v625, %v621
    %v742 = vpack.c.b16 %v626, %v622
    %v743 = vpack.c.b16 %v627, %v623
    %v744 = vpack.c.b16 %v632, %v628
    %v745 = vpack.c.b16 %v633, %v629
    %v746 = vpack.c.b16 %v634, %v630
    %v747 = vpack.c.b16 %v635, %v631
    %v748 = vpack.c.b16 %v640, %v636
    %v749 = vpack.c.b16 %v641, %v637
    %v750 = vpack.c.b16 %v642, %v638
    %v751 = vpack.c.b16 %v643, %v639
    %v752 = vpack.c.b16 %v648, %v644
    %v753 = vpack.c.b16 %v649, %v645
    %v754 = vpack.c.b16 %v650, %v646
    %v755 = vpack.c.b16 %v651, %v647
    %v756 = vpack.c.b16 %v656, %v652
    %v757 = vpack.c.b16 %v657, %v653
    %v758 = vpack.c.b16 %v658, %v654
    %v759 = vpack.c.b16 %v659, %v655
    %v760 = vpack.c.b16 %v664, %v660
    %v761 = vpack.c.b16 %v665, %v661
    %v762 = vpack.c.b16 %v666, %v662
    %v763 = vpack.c.b16 %v667, %v663
    %v764 = vpack.c.b16 %v672, %v668
    %v765 = vpack.c.b16 %v673, %v669
    %v766 = vpack.c.b16 %v674, %v670
    %v767 = vpack.c.b16 %v675, %v671
    %v768 = vpack.c.b16 %v680, %v676
    %v769 = vpack.c.b16 %v681, %v677
    %v770 = vpack.c.b16 %v682, %v678
    %v771 = vpack.c.b16 %v683, %v679
    %v772 = vpack.c.b16 %v688, %v684
    %v773 = vpack.c.b16 %v689, %v685
    %v774 = vpack.c.b16 %v690, %v686
    %v775 = vpack.c.b16 %v691, %v687
    %v776 = vpack.c.b16 %v696, %v692
    %v777 = vpack.c.b16 %v697, %v693
    %v778 = vpack.c.b16 %v698, %v694
    %v779 = vpack.c.b16 %v699, %v695
    %v780 = vpack.c.b16 %v704, %v700
    %v781 = vpack.c.b16 %v705, %v701
    %v782 = vpack.c.b16 %v706, %v702
    %v783 = vpack.c.b16 %v707, %v703
    %v784 = vpack.c.b16 %v712, %v708
    %v785 = vpack.c.b16 %v713, %v709
    %v786 = vpack.c.b16 %v714, %v710
    %v787 = vpack.c.b16 %v715, %v711
    %v788 = vpack.c.b16 %v720, %v716
    %v789 = vpack.c.b16 %v721, %v717
    %v790 = vpack.c.b16 %v722, %v718
    %v791 = vpack.c.b16 %v723, %v719
    %v792 = vpack.c.b16 %v728, %v724
    %v793 = vpack.c.b16 %v729, %v725
    %v794 = vpack.c.b16 %v730, %v726
    %v795 = vpack.c.b16 %v731, %v727
    %860 = vmatprep.subr.bf16.mxu0 %v733
    %861 = vmatpush1.bf16.msra.mxu0 %v732
    %862 = vmatprep.subr.bf16.mxu0 %v737
    %863 = vmatpush1.bf16.msra.mxu0 %v736
    %864 = vmatprep.subr.bf16.mxu0 %v741
    %865 = vmatpush1.bf16.msra.mxu0 %v740
    %866 = vmatprep.subr.bf16.mxu0 %v745
    %867 = vmatpush1.bf16.msra.mxu0 %v744
    %868 = vmatprep.subr.bf16.mxu0 %v749
    %869 = vmatpush1.bf16.msra.mxu0 %v748
    %870 = vmatprep.subr.bf16.mxu0 %v753
    %871 = vmatpush1.bf16.msra.mxu0 %v752
    %872 = vmatprep.subr.bf16.mxu0 %v757
    %873 = vmatpush1.bf16.msra.mxu0 %v756
    %874 = vmatprep.subr.bf16.mxu0 %v761
    %875 = vmatpush1.bf16.msra.mxu0 %v760
    %876 = vmatprep.subr.bf16.mxu0 %v765
    %877 = vmatpush1.bf16.msra.mxu0 %v764
    %878 = vmatprep.subr.bf16.mxu0 %v769
    %879 = vmatpush1.bf16.msra.mxu0 %v768
    %880 = vmatprep.subr.bf16.mxu0 %v773
    %881 = vmatpush1.bf16.msra.mxu0 %v772
    %882 = vmatprep.subr.bf16.mxu0 %v777
    %883 = vmatpush1.bf16.msra.mxu0 %v776
    %884 = vmatprep.subr.bf16.mxu0 %v781
    %885 = vmatpush1.bf16.msra.mxu0 %v780
    %886 = vmatprep.subr.bf16.mxu0 %v785
    %887 = vmatpush1.bf16.msra.mxu0 %v784
    %888 = vmatprep.subr.bf16.mxu0 %v789
    %889 = vmatpush1.bf16.msra.mxu0 %v788
    %890 = vmatprep.subr.bf16.mxu0 %v793
    %891 = vmatpush1.bf16.msra.mxu0 %v792
    %892 = vmatprep.mubr.bf16.mxu0 %v518
    %893 = vmatmul.mubr.bf16.gmra.mrb[0].mxu0 %v517
    %v894 = vpop.f32.mrb[0].mxu0
    %v895 = vadd.f32 %v523, %v894
    %v896 = vpop.f32.mrb[0].mxu0
    %v897 = vadd.f32 %v527, %v896
    %v898 = vpop.f32.mrb[0].mxu0
    %v899 = vpop.f32.mrb[0].mxu0
    %900 = vdwg.mxu0
    %901 = vmatprep.subr.bf16.mxu0 %v735
    %902 = vmatpush1.bf16.msra.mxu0 %v734
    %903 = vmatprep.subr.bf16.mxu0 %v739
    %904 = vmatpush1.bf16.msra.mxu0 %v738
    %905 = vmatprep.subr.bf16.mxu0 %v743
    %906 = vmatpush1.bf16.msra.mxu0 %v742
    %907 = vmatprep.subr.bf16.mxu0 %v747
    %908 = vmatpush1.bf16.msra.mxu0 %v746
    %909 = vmatprep.subr.bf16.mxu0 %v751
    %910 = vmatpush1.bf16.msra.mxu0 %v750
    %911 = vmatprep.subr.bf16.mxu0 %v755
    %912 = vmatpush1.bf16.msra.mxu0 %v754
    %913 = vmatprep.subr.bf16.mxu0 %v759
    %914 = vmatpush1.bf16.msra.mxu0 %v758
    %915 = vmatprep.subr.bf16.mxu0 %v763
    %916 = vmatpush1.bf16.msra.mxu0 %v762
    %917 = vmatprep.subr.bf16.mxu0 %v767
    %918 = vmatpush1.bf16.msra.mxu0 %v766
    %919 = vmatprep.subr.bf16.mxu0 %v771
    %920 = vmatpush1.bf16.msra.mxu0 %v770
    %921 = vmatprep.subr.bf16.mxu0 %v775
    %922 = vmatpush1.bf16.msra.mxu0 %v774
    %923 = vmatprep.subr.bf16.mxu0 %v779
    %924 = vmatpush1.bf16.msra.mxu0 %v778
    %925 = vmatprep.subr.bf16.mxu0 %v783
    %926 = vmatpush1.bf16.msra.mxu0 %v782
    %927 = vmatprep.subr.bf16.mxu0 %v787
    %928 = vmatpush1.bf16.msra.mxu0 %v786
    %929 = vmatprep.subr.bf16.mxu0 %v791
    %930 = vmatpush1.bf16.msra.mxu0 %v790
    %931 = vmatprep.subr.bf16.mxu0 %v795
    %932 = vmatpush1.bf16.msra.mxu0 %v794
    %933 = vmatprep.mubr.bf16.mxu0 %v518
    %934 = vmatmul.mubr.bf16.gmra.mrb[0].mxu0 %v517
    %v935 = vpop.f32.mrb[0].mxu0
    %v936 = vadd.f32 %v531, %v935
    %v937 = vpop.f32.mrb[0].mxu0
    %v938 = vadd.f32 %v535, %v937
    %v939 = vpop.f32.mrb[0].mxu0
    %v940 = vpop.f32.mrb[0].mxu0
    %941 = vdwg.mxu0
    %v942 = vmul.f32 %v895, 0.5
    %v943 = vtanh.pop %v942
    %v944 = vmul.f32 %v943, 0.5
    %v945 = vadd.f32 %v944, 0.5
    %v946 = vmul.f32 %v897, 0.5
    %v947 = vtanh.pop %v946
    %v948 = vmul.f32 %v947, 0.5
    %v949 = vadd.f32 %v948, 0.5
    %v950 = vtanh.pop %v936
    %v951 = vmul.f32 %v938, 0.5
    %v952 = vtanh.pop %v951
    %v953 = vmul.f32 %v952, 0.5
    %v954 = vadd.f32 %v953, 0.5
    %v955 = vmul.f32 %v949, %v95
    %v956 = vmul.f32 %v945, %v950
    %v957 = vadd.f32 %v955, %v956
    %v958 = vtanh.pop %v957
    %v959 = vmul.f32 %v954, %v958
    %v961 = vlaneseq
    %v962 = vshrl.u32 %v961, 7
    %v963 = vsub.s32 0, %v962
    %v964 = vrot.slane %v195, %v963
    %v966 = vmul.f32 %v959, %v964
    %967 = vadd.xlane.f32.xlu0 %v966
    %v968 = vpop.xlane.xlu0 %967
    %v970 = vlaneseq
    %v971 = vshrl.u32 %v970, 7
    %v972 = vsub.s32 0, %v971
    %v973 = vrot.slane %v196, %v972
    %v975 = vadd.f32 %v968, %v973
    %977 = vset.pattern.permute.xlu0 0
    %978 = vperm.xlu0 %977, %v975
    %v979 = vpop.permute.xlu0 %978
    %981 = vst [vmem:[#allocation9] sm:$0xff] %v979
    %982 = vst [vmem:[#allocation10] sm:$0xff] %v516
    %983 = vst [vmem:[#allocation12] sm:$0xff] %v514
    %984 = vst [vmem:[#allocation13] sm:$0xff] %v959
    %985 = vst [vmem:[#allocation15] sm:$0xff] %v957
    // Predicated region
    $region62: #{tpu_custom_call.1} parent=1 // pred_check
      _
    $region63: #{tpu_custom_call.1} parent=1 // pred_check_branch
      %987 = sbr.rel (0) target = $region65
    $region64: #{tpu_custom_call.1} parent=1 // pred_region
      %s989 = ssub.s32 128, 128
      %990 = vsyncadd [#allocation5], %s989
      %s992 = sshll.u32 [#allocation9], 4
      %s993 = int_to_ptr.vmem [resolvable:$true] %s992
      %995 = dma.vmem_to_hbm [thread:$0]  %s993, 128, %s12, [#allocation5]
    $region65: #{tpu_custom_call.1} parent=1 // pred_fallthru
      _
    // Predicated region
    $region66: #{tpu_custom_call.1} parent=1 // pred_check
      _
    $region67: #{tpu_custom_call.1} parent=1 // pred_check_branch
      %997 = sbr.rel (0) target = $region69
    $region68: #{tpu_custom_call.1} parent=1 // pred_region
      %s999 = ssub.s32 128, 128
      %1000 = vsyncadd [#allocation11], %s999
      %s1002 = sshll.u32 [#allocation10], 4
      %s1003 = int_to_ptr.vmem [resolvable:$true] %s1002
      %1005 = dma.vmem_to_hbm [thread:$0]  %s1003, 128, %s13, [#allocation11]
    $region69: #{tpu_custom_call.1} parent=1 // pred_fallthru
      _
    // Predicated region
    $region70: #{tpu_custom_call.1} parent=1 // pred_check
      _
    $region71: #{tpu_custom_call.1} parent=1 // pred_check_branch
      %1007 = sbr.rel (0) target = $region73
    $region72: #{tpu_custom_call.1} parent=1 // pred_region
      %s1009 = ssub.s32 128, 128
      %1010 = vsyncadd [#allocation11], %s1009
      %s1012 = sshll.u32 [#allocation12], 4
      %s1013 = int_to_ptr.vmem [resolvable:$true] %s1012
      %1015 = dma.vmem_to_hbm [thread:$0]  %s1013, 128, %s14, [#allocation11]
    $region73: #{tpu_custom_call.1} parent=1 // pred_fallthru
      _
    // Predicated region
    $region74: #{tpu_custom_call.1} parent=1 // pred_check
      _
    $region75: #{tpu_custom_call.1} parent=1 // pred_check_branch
      %1017 = sbr.rel (0) target = $region77
    $region76: #{tpu_custom_call.1} parent=1 // pred_region
      %s1019 = ssub.s32 128, 128
      %1020 = vsyncadd [#allocation14], %s1019
      %s1022 = sshll.u32 [#allocation13], 4
      %s1023 = int_to_ptr.vmem [resolvable:$true] %s1022
      %1025 = dma.vmem_to_hbm [thread:$0]  %s1023, 128, %s15, [#allocation14]
    $region77: #{tpu_custom_call.1} parent=1 // pred_fallthru
      _
    // Predicated region
    $region78: #{tpu_custom_call.1} parent=1 // pred_check
      _
    $region79: #{tpu_custom_call.1} parent=1 // pred_check_branch
      %1027 = sbr.rel (0) target = $region81
    $region80: #{tpu_custom_call.1} parent=1 // pred_region
      %s1029 = ssub.s32 128, 128
      %1030 = vsyncadd [#allocation14], %s1029
      %s1032 = sshll.u32 [#allocation15], 4
      %s1033 = int_to_ptr.vmem [resolvable:$true] %s1032
      %1035 = dma.vmem_to_hbm [thread:$0]  %s1033, 128, %s16, [#allocation14]
    $region81: #{tpu_custom_call.1} parent=1 // pred_fallthru
      _
    // Predicated region
    $region82: #{tpu_custom_call.1} parent=1 // pred_check
      _
    $region83: #{tpu_custom_call.1} parent=1 // pred_check_branch
      %1037 = sbr.rel (0) target = $region85
    $region84: #{tpu_custom_call.1} parent=1 // pred_region
      %1038 = dma.done [#allocation5], 128
    $region85: #{tpu_custom_call.1} parent=1 // pred_fallthru
      _
    // Predicated region
    $region86: #{tpu_custom_call.1} parent=1 // pred_check
      _
    $region87: #{tpu_custom_call.1} parent=1 // pred_check_branch
      %1040 = sbr.rel (0) target = $region89
    $region88: #{tpu_custom_call.1} parent=1 // pred_region
      %1041 = dma.done [#allocation11], 128
    $region89: #{tpu_custom_call.1} parent=1 // pred_fallthru
      _
    // Predicated region
    $region90: #{tpu_custom_call.1} parent=1 // pred_check
      _
    $region91: #{tpu_custom_call.1} parent=1 // pred_check_branch
      %1043 = sbr.rel (0) target = $region93
    $region92: #{tpu_custom_call.1} parent=1 // pred_region
      %1044 = dma.done [#allocation11], 128
    $region93: #{tpu_custom_call.1} parent=1 // pred_fallthru
      _
    // Predicated region
    $region94: #{tpu_custom_call.1} parent=1 // pred_check
      _
    $region95: #{tpu_custom_call.1} parent=1 // pred_check_branch
      %1046 = sbr.rel (0) target = $region97
    $region96: #{tpu_custom_call.1} parent=1 // pred_region
      %1047 = dma.done [#allocation14], 128
    $region97: #{tpu_custom_call.1} parent=1 // pred_fallthru
      _
    // Predicated region
    $region98: #{tpu_custom_call.1} parent=1 // pred_check
      _
    $region99: #{tpu_custom_call.1} parent=1 // pred_check_branch
      %1049 = sbr.rel (0) target = $region101
    $region100: #{tpu_custom_call.1} parent=1 // pred_region
      %1050 = dma.done [#allocation14], 128
    $region101: #{tpu_custom_call.1} parent=1 // pred_fallthru
      _
    %1051 = vsyncpa [#allocation4], 1
    %1052 = vsyncpa [#allocation7], 1
    %1053 = vsyncpa [#allocation5], 1
    %1054 = vsyncpa [#allocation11], 1
    %1055 = vsyncpa [#allocation14], 1

</llo_original>
